<compile_context>
chip_gen: v6e
topology: v6e:2x2x1
jax: 0.10.0
libtpu: 0.0.40
codegen_flags: <defaults>
</compile_context>

<pallas_src>
import functools

import jax
import jax.numpy as jnp
from jax.experimental import pallas as pl
from jax.experimental.pallas import tpu as pltpu


def _loss_partials_kernel(x_ref, t_ref, o_ref, *, tm, m_total):
    """Per-column partial loss for one (N, tm) tile -> (1, tm)."""
    x = x_ref[...].astype(jnp.float32)            # +1e-8 on x is a softmax no-op
    t = t_ref[...].astype(jnp.float32)

    m = jnp.max(x, axis=0, keepdims=True)         # (1, tm)
    e = jnp.exp(x - m)                            # only N x tm transcendental
    denom = jnp.sum(e, axis=0, keepdims=True)     # (1, tm)

    # logp = (x - m) - log(denom)
    # per_col = -sum(t * logp, 0) = sum(t*(m - x), 0) + log(denom) * sum(t, 0)
    # TODO(synk): the inner +1e-8 of log(probs + 1e-8) is dropped by this
    # log-space rewrite; the difference is O(1e-8 / prob), negligible except
    # for pathologically small target probabilities (PyTorch clamps ~18.4).
    per_col = (jnp.sum(t * (m - x), axis=0, keepdims=True)
               + jnp.log(denom) * jnp.sum(t, axis=0, keepdims=True))

    # Mask columns past the true extent: the ragged final tile's OOB lanes are
    # undefined (possibly NaN/inf after exp); per-column math keeps garbage in
    # its own lanes, and this select keeps it out of the output entirely.
    col = (pl.program_id(0) * tm
           + jax.lax.broadcasted_iota(jnp.int32, per_col.shape, 1))
    o_ref[...] = jnp.where(col < m_total, per_col, 0.0)


def _round_up(x: int, m: int) -> int:
    return (x + m - 1) // m * m


def softmax_ranking_loss(inputs: jax.Array, targets: jax.Array,
                         *, vmem_input_budget: int = 8 * 1024 * 1024
                         ) -> jax.Array:
    assert inputs.shape == targets.shape
    n = inputs.shape[0]
    x2 = inputs.reshape(n, -1)
    t2 = targets.reshape(n, -1)
    N, M = x2.shape

    # HBM bytes per lane-column across both operands (native dtypes).
    bytes_per_col = N * (x2.dtype.itemsize + t2.dtype.itemsize)

    # Largest 128-multiple lane tile whose double-buffered input blocks
    # (2 pipeline buffers x (x block + t block)) fit the VMEM budget.
    tm_cap = max(128, (vmem_input_budget // (2 * bytes_per_col)) // 128 * 128)
    # Keep >= 4 grid steps for large M: both v7x TensorCores get work on the
    # "parallel" axis and the pipeline has steps to overlap, while each step
    # still moves multi-MiB of HBM traffic.
    tm_target = max(128, _round_up(pl.cdiv(M, 4), 128))
    tm = min(tm_cap, tm_target, _round_up(M, 128))

    grid_m = pl.cdiv(M, tm)      # no input padding; last tile may be ragged

    # 32 MiB covers the 8 MiB input budget with headroom on every generation;
    # only grow it if a very tall N forces even the minimal tm=128 tile over.
    vmem_limit = 32 * 1024 * 1024
    min_block_bytes = 2 * 128 * bytes_per_col
    if min_block_bytes + (4 << 20) > vmem_limit:
        # TODO(synk): very tall N (>~4K f32 rows) should switch to an N-tiled
        # two-pass / online-softmax variant instead of just raising the limit.
        vmem_limit = min(min_block_bytes + (4 << 20), 48 * 1024 * 1024)

    kernel = functools.partial(_loss_partials_kernel, tm=tm, m_total=M)

    per_col = pl.pallas_call(
        kernel,
        out_shape=jax.ShapeDtypeStruct((1, M), jnp.float32),
        grid=(grid_m,),
        in_specs=[
            pl.BlockSpec((N, tm), lambda j: (0, j)),
            pl.BlockSpec((N, tm), lambda j: (0, j)),
        ],
        out_specs=pl.BlockSpec((1, tm), lambda j: (0, j)),
        compiler_params=pltpu.CompilerParams(
            dimension_semantics=("parallel",),
            vmem_limit_bytes=vmem_limit,
        ),
    )(x2, t2)

    # Mean over the true trailing extent.
    return jnp.sum(per_col) / jnp.float32(M)


if __name__ == "__main__":
    key = jax.random.PRNGKey(0)
    k1, k2 = jax.random.split(key)

    # Small shapes consistent with the module: candidates x proposals,
    # softmax over dim 0.  M=300 exercises the ragged-tile masking path
    # (tm=128 -> grid of 3 with a 44-column final tile).
    N, M = 8, 300
    inputs = jax.random.normal(k1, (N, M), dtype=jnp.float32)
    idx = jax.random.randint(k2, (M,), 0, N)
    targets = jax.nn.one_hot(idx, N, dtype=jnp.float32).T      # (N, M)

    loss = jax.block_until_ready(softmax_ranking_loss(inputs, targets))

    # Pure-JAX reference with the exact PyTorch math.
    probs_ref = jax.nn.softmax(inputs + 1e-8, axis=0)
    loss_ref = -jnp.sum(jnp.log(probs_ref + 1e-8) * targets, axis=0).mean()
    assert jnp.allclose(loss, loss_ref, atol=1e-4, rtol=1e-4), (loss, loss_ref)

    print("KERNEL_OK")
</pallas_src>

<mosaic_0001>
module attributes {stable_mosaic.version = 11 : i64} {
  func.func @_loss_partials_kernel(%arg0: i32, %arg1: memref<8x128xf32, #tpu.memory_space<vmem>>, %arg2: memref<8x128xf32, #tpu.memory_space<vmem>>, %arg3: memref<1x128xf32, #tpu.memory_space<vmem>>) attributes {dimension_semantics = [#tpu.dimension_semantics<parallel>], iteration_bounds = array<i64: 3>, scalar_prefetch = 0 : i64, scratch_operands = 0 : i64, tpu.core_type = #tpu.core_type<tc>, window_params = [{transform_indices = @transform_0, window_bounds = array<i64: 8, 128>}, {transform_indices = @transform_1, window_bounds = array<i64: 8, 128>}, {transform_indices = @transform_2, window_bounds = array<i64: 1, 128>}]} {
    %c0 = arith.constant 0 : index
    %c0_0 = arith.constant 0 : index
    %0 = vector.load %arg1[%c0, %c0_0] : memref<8x128xf32, #tpu.memory_space<vmem>>, vector<8x128xf32>
    %c0_1 = arith.constant 0 : index
    %c0_2 = arith.constant 0 : index
    %1 = vector.load %arg2[%c0_1, %c0_2] : memref<8x128xf32, #tpu.memory_space<vmem>>, vector<8x128xf32>
    %cst = arith.constant dense<0xFF800000> : vector<128xf32>
    %2 = vector.multi_reduction <maximumf>, %0, %cst [0] : vector<8x128xf32> to vector<128xf32>
    %3 = vector.shape_cast %2 : vector<128xf32> to vector<1x128xf32>
    %4 = vector.broadcast %3 : vector<1x128xf32> to vector<8x128xf32>
    %5 = arith.subf %0, %4 : vector<8x128xf32>
    %6 = math.exp %5 : vector<8x128xf32>
    %cst_3 = arith.constant dense<0.000000e+00> : vector<128xf32>
    %7 = vector.multi_reduction <add>, %6, %cst_3 [0] : vector<8x128xf32> to vector<128xf32>
    %8 = vector.shape_cast %7 : vector<128xf32> to vector<1x128xf32>
    %9 = vector.broadcast %3 : vector<1x128xf32> to vector<8x128xf32>
    %10 = arith.subf %9, %0 : vector<8x128xf32>
    %11 = arith.mulf %1, %10 : vector<8x128xf32>
    %cst_4 = arith.constant dense<0.000000e+00> : vector<128xf32>
    %12 = vector.multi_reduction <add>, %11, %cst_4 [0] : vector<8x128xf32> to vector<128xf32>
    %13 = vector.shape_cast %12 : vector<128xf32> to vector<1x128xf32>
    %14 = math.log %8 : vector<1x128xf32>
    %cst_5 = arith.constant dense<0.000000e+00> : vector<128xf32>
    %15 = vector.multi_reduction <add>, %1, %cst_5 [0] : vector<8x128xf32> to vector<128xf32>
    %16 = vector.shape_cast %15 : vector<128xf32> to vector<1x128xf32>
    %17 = arith.mulf %14, %16 : vector<1x128xf32>
    %18 = arith.addf %13, %17 : vector<1x128xf32>
    %c128_i32 = arith.constant 128 : i32
    %19 = arith.muli %arg0, %c128_i32 : i32
    %20 = tpu.iota {dimensions = array<i32: 1>} : vector<1x128xi32>
    %21 = vector.broadcast %19 : i32 to vector<1x128xi32>
    %22 = arith.addi %21, %20 : vector<1x128xi32>
    %c300_i32 = arith.constant 300 : i32
    %23 = vector.broadcast %c300_i32 : i32 to vector<1x128xi32>
    %24 = arith.cmpi slt, %22, %23 : vector<1x128xi32>
    %cst_6 = arith.constant 0.000000e+00 : f32
    %25 = vector.broadcast %cst_6 : f32 to vector<1x128xf32>
    %26 = arith.select %24, %18, %25 : vector<1x128xi1>, vector<1x128xf32>
    %c0_7 = arith.constant 0 : index
    %c0_8 = arith.constant 0 : index
    %27 = vector.load %arg3[%c0_7, %c0_8] : memref<1x128xf32, #tpu.memory_space<vmem>>, vector<1x128xf32>
    tpu.vector_store %arg3[%c0_7, %c0_8], %26 {strides = array<i32>} : memref<1x128xf32, #tpu.memory_space<vmem>>, vector<1x128xf32>,
    return
  }
  func.func @transform_0(%arg0: i32) -> (i32, i32) {
    %c0_i32 = arith.constant 0 : i32
    %c0_i32_0 = arith.constant 0 : i32
    return %c0_i32, %arg0 : i32, i32
  }
  func.func @transform_1(%arg0: i32) -> (i32, i32) {
    %c0_i32 = arith.constant 0 : i32
    %c0_i32_0 = arith.constant 0 : i32
    return %c0_i32, %arg0 : i32, i32
  }
  func.func @transform_2(%arg0: i32) -> (i32, i32) {
    %c0_i32 = arith.constant 0 : i32
    %c0_i32_0 = arith.constant 0 : i32
    return %c0_i32, %arg0 : i32, i32
  }
}

</mosaic_0001>

<llo_original>
// kernel: tpu_custom_call.1
$region0: #{tpu_custom_call.1}
  #allocation0 [shape = 'u32[]', space=smem, size = 0x4, offset = 0x4, fixed_abs, tag = 'smem constant byte address 0x4 - core index']
  #allocation1 [shape = 'u32[144,128]{1,0:T(1,128)}', space=vmem, size = 0x12000, scoped, tag = 'internal scratch']
  %s0 = inlined_call_operand.hbm [shape: f32[8,300], index: 0, kind: input, shape index: {}]
  %s1 = inlined_call_operand.hbm [shape: f32[8,300], index: 1, kind: input, shape index: {}]
  %s2 = inlined_call_operand.hbm [shape: f32[1,300], index: 2, kind: output, shape index: {}]
  %s3 = sld [smem:[#allocation0]]
  $region49: #{tpu_custom_call.1} parent=0
    _
  %s5 = ssub.s32 1, %s3
  %s6 = scalar_select 0, %s5, %s3
  $region1: #{tpu_custom_call.1} parent=0
    #allocation2 [shape = 'u8[8192]{0}', space=vmem, size = 0x2000, scoped, tag = 'input window, operand 0']
    #allocation3 [shape = 's32[2]{0}', space=sflag, size = 0x8, scoped, tag = 'scoped memory for tpu_custom_call.1']
    #allocation4 [shape = 's32[2]{0}', space=sflag, size = 0x8, scoped, tag = 'scoped memory for tpu_custom_call.1']
    #allocation5 [shape = 'u8[8192]{0}', space=vmem, size = 0x2000, scoped, tag = 'input window, operand 1']
    #allocation6 [shape = 's32[2]{0}', space=sflag, size = 0x8, scoped, tag = 'scoped memory for tpu_custom_call.1']
    #allocation7 [shape = 'u8[1024]{0}', space=vmem, size = 0x400, scoped, tag = 'output window, operand 0']
    %7 = vsyncpa [#allocation3], 0
    %s8 = scalar_lea.sflag [#allocation3], 1
    %9 = vsyncpa %s8, 0
    %10 = vsyncpa [#allocation6], 0
    %s11 = scalar_lea.sflag [#allocation6], 1
    %12 = vsyncpa %s11, 0
    %13 = vsyncpa [#allocation4], 0
    %s14 = scalar_lea.sflag [#allocation4], 1
    %15 = vsyncpa %s14, 0
    loop: start=0, step=1, limit=5
    $region2: #{tpu_custom_call.1} parent=1 // loop_pre_header
      _
    $region3: #{tpu_custom_call.1} parent=1 // loop_header
      %s17 = sphi 0, %s21
      %p18 = scmp.ge.s32.totalorder %s17, 5
      %s27 = sphi 0, %s29
      %s30 = sphi 0, %s27
      %s31 = sphi 0, %s30
      %s47 = sphi 0, %s31
      %s53 = sphi 0, %s55
      %s56 = sphi 0, %s53
      %s57 = sphi 0, %s56
      %s73 = sphi 0, %s57
      %s79 = sphi 0, %s81
      %s82 = sphi 0, %s79
      %s83 = sphi 0, %s82
      %s99 = sphi 0, %s83
    $region4: #{tpu_custom_call.1} parent=1 // loop_header_branch
      %20 = sbr.rel (%p18) target = $region8
    $region5: #{tpu_custom_call.1} parent=1 // loop_body
      %s22 = ssub.s32 %s17, 1
      %s23 = ssub.s32 %s17, 2
      %s24 = sadd.s32 %s17, 1
      %s25 = ssub.s32 %s17, %s24
      %p26 = scmp.eq.s32.totalorder %s25, 0
      %s28 = sadd.s32 %s27, 1
      %s29 = scalar_select %p26, %s27, %s28
      %p32 = pneg %p26
      %p33 = scmp.eq.s32.totalorder %s17, 2
      %p34 = por %p32, %p33
      %p35 = scmp.ne.s32.totalorder %s27, %s30
      %p36 = scmp.eq.s32.totalorder %s17, 0
      %p37 = por %p35, %p36
      %p38 = scmp.ne.s32.totalorder %s27, %s30
      %p39 = scmp.eq.s32.totalorder %s22, 2
      %p40 = por %p38, %p39
      %p41 = scmp.ne.s32.totalorder %s30, %s31
      %p42 = scmp.eq.s32.totalorder %s22, 0
      %p43 = por %p41, %p42
      %p44 = scmp.ne.s32.totalorder %s30, %s31
      %p45 = scmp.eq.s32.totalorder %s23, 2
      %p46 = por %p44, %p45
      %p48 = scmp.ne.s32.totalorder %s31, %s47
      %p49 = scmp.eq.s32.totalorder %s23, 0
      %p50 = por %p48, %p49
      %s51 = ssub.s32 %s17, %s24
      %p52 = scmp.eq.s32.totalorder %s51, 0
      %s54 = sadd.s32 %s53, 1
      %s55 = scalar_select %p52, %s53, %s54
      %p58 = pneg %p52
      %p59 = scmp.eq.s32.totalorder %s17, 2
      %p60 = por %p58, %p59
      %p61 = scmp.ne.s32.totalorder %s53, %s56
      %p62 = scmp.eq.s32.totalorder %s17, 0
      %p63 = por %p61, %p62
      %p64 = scmp.ne.s32.totalorder %s53, %s56
      %p65 = scmp.eq.s32.totalorder %s22, 2
      %p66 = por %p64, %p65
      %p67 = scmp.ne.s32.totalorder %s56, %s57
      %p68 = scmp.eq.s32.totalorder %s22, 0
      %p69 = por %p67, %p68
      %p70 = scmp.ne.s32.totalorder %s56, %s57
      %p71 = scmp.eq.s32.totalorder %s23, 2
      %p72 = por %p70, %p71
      %p74 = scmp.ne.s32.totalorder %s57, %s73
      %p75 = scmp.eq.s32.totalorder %s23, 0
      %p76 = por %p74, %p75
      %s77 = ssub.s32 %s17, %s24
      %p78 = scmp.eq.s32.totalorder %s77, 0
      %s80 = sadd.s32 %s79, 1
      %s81 = scalar_select %p78, %s79, %s80
      %p84 = pneg %p78
      %p85 = scmp.eq.s32.totalorder %s17, 2
      %p86 = por %p84, %p85
      %p87 = scmp.ne.s32.totalorder %s79, %s82
      %p88 = scmp.eq.s32.totalorder %s17, 0
      %p89 = por %p87, %p88
      %p90 = scmp.ne.s32.totalorder %s79, %s82
      %p91 = scmp.eq.s32.totalorder %s22, 2
      %p92 = por %p90, %p91
      %p93 = scmp.ne.s32.totalorder %s82, %s83
      %p94 = scmp.eq.s32.totalorder %s22, 0
      %p95 = por %p93, %p94
      %p96 = scmp.ne.s32.totalorder %s82, %s83
      %p97 = scmp.eq.s32.totalorder %s23, 2
      %p98 = por %p96, %p97
      %p100 = scmp.ne.s32.totalorder %s83, %s99
      %p101 = scmp.eq.s32.totalorder %s23, 0
      %p102 = por %p100, %p101
      %p103 = scmp.le.s32.totalorder 1, %s17
      %p104 = scmp.lt.s32.totalorder %s17, 4
      %p105 = pnand %p103, %p104
      %p106 = pneg %p105
      // Predicated region
      $region9: #{tpu_custom_call.1} parent=5 // pred_check
        _
      $region10: #{tpu_custom_call.1} parent=5 // pred_check_branch
        %108 = sbr.rel (%p105) target = $region12
      $region11: #{tpu_custom_call.1} parent=5 // pred_region
        %s109 = ssub.s32 %s17, 1
      $region12: #{tpu_custom_call.1} parent=5 // pred_fallthru
        _
      %p110 = scmp.lt.s32.totalorder %s17, 3
      // Predicated region
      $region13: #{tpu_custom_call.1} parent=5 // pred_check
        %p111 = pneg %p110
      $region14: #{tpu_custom_call.1} parent=5 // pred_check_branch
        %113 = sbr.rel (%p111) target = $region16
      $region15: #{tpu_custom_call.1} parent=5 // pred_region
        // Predicated region
        $region17: #{tpu_custom_call.1} parent=15 // pred_check
          %p114 = pneg %p37
        $region18: #{tpu_custom_call.1} parent=15 // pred_check_branch
          %116 = sbr.rel (%p114) target = $region20
        $region19: #{tpu_custom_call.1} parent=15 // pred_region
          %s117 = sand.u32 %s27, 1
          %s118 = scalar_lea.sflag [#allocation3], %s117
          %s119 = sand.u32 %s27, 1
          %s120 = smul.addr %s119, 8
          %s121 = scalar_lea.vmem [#allocation2], %s120
          %s123 = ssub.s32 128, 128
          %124 = vsyncadd %s118, %s123
          %s125 = smul.addr %s17, 128
          %s126 = scalar_lea.hbm %s0, %s125
          %s128 = sshll.u32 %s121, 4
          %s129 = int_to_ptr.vmem [resolvable:$true] %s128
          %131 = dma.hbm_to_vmem [thread:$0]  %s126, 128, %s129, %s118
        $region20: #{tpu_custom_call.1} parent=15 // pred_fallthru
          _
        // Predicated region
        $region21: #{tpu_custom_call.1} parent=15 // pred_check
          %p132 = pneg %p63
        $region22: #{tpu_custom_call.1} parent=15 // pred_check_branch
          %134 = sbr.rel (%p132) target = $region24
        $region23: #{tpu_custom_call.1} parent=15 // pred_region
          %s135 = sand.u32 %s53, 1
          %s136 = scalar_lea.sflag [#allocation6], %s135
          %s137 = sand.u32 %s53, 1
          %s138 = smul.addr %s137, 8
          %s139 = scalar_lea.vmem [#allocation5], %s138
          %s141 = ssub.s32 128, 128
          %142 = vsyncadd %s136, %s141
          %s143 = smul.addr %s17, 128
          %s144 = scalar_lea.hbm %s1, %s143
          %s146 = sshll.u32 %s139, 4
          %s147 = int_to_ptr.vmem [resolvable:$true] %s146
          %149 = dma.hbm_to_vmem [thread:$0]  %s144, 128, %s147, %s136
        $region24: #{tpu_custom_call.1} parent=15 // pred_fallthru
          _
      $region16: #{tpu_custom_call.1} parent=5 // pred_fallthru
        _
      %p150 = scmp.le.s32.totalorder 1, %s17
      %p151 = scmp.lt.s32.totalorder %s17, 4
      %p152 = pnand %p150, %p151
      %p153 = pneg %p152
      // Predicated region
      $region25: #{tpu_custom_call.1} parent=5 // pred_check
        _
      $region26: #{tpu_custom_call.1} parent=5 // pred_check_branch
        %155 = sbr.rel (%p152) target = $region28
      $region27: #{tpu_custom_call.1} parent=5 // pred_region
        %s156 = ssub.s32 %s17, 1
        %s157 = sand.u32 %s30, 1
        %s158 = scalar_lea.sflag [#allocation3], %s157
        %s159 = sand.u32 %s30, 1
        %s160 = smul.addr %s159, 8
        %s161 = scalar_lea.vmem [#allocation2], %s160
        // Predicated region
        $region29: #{tpu_custom_call.1} parent=27 // pred_check
          %p162 = pneg %p43
        $region30: #{tpu_custom_call.1} parent=27 // pred_check_branch
          %164 = sbr.rel (%p162) target = $region32
        $region31: #{tpu_custom_call.1} parent=27 // pred_region
          %165 = dma.done %s158, 128
        $region32: #{tpu_custom_call.1} parent=27 // pred_fallthru
          _
        %s166 = sand.u32 %s56, 1
        %s167 = scalar_lea.sflag [#allocation6], %s166
        %s168 = sand.u32 %s56, 1
        %s169 = smul.addr %s168, 8
        %s170 = scalar_lea.vmem [#allocation5], %s169
        // Predicated region
        $region33: #{tpu_custom_call.1} parent=27 // pred_check
          %p171 = pneg %p69
        $region34: #{tpu_custom_call.1} parent=27 // pred_check_branch
          %173 = sbr.rel (%p171) target = $region36
        $region35: #{tpu_custom_call.1} parent=27 // pred_region
          %174 = dma.done %s167, 128
        $region36: #{tpu_custom_call.1} parent=27 // pred_fallthru
          _
        %s175 = sand.u32 %s30, 1
        %s176 = scalar_lea.sflag [#allocation3], %s175
        %s177 = sand.u32 %s30, 1
        %s178 = smul.addr %s177, 8
        %s179 = scalar_lea.vmem [#allocation2], %s178
        %p180 = pneg %p43
        %p181 = pneg %p40
        %s182 = sand.u32 %s56, 1
        %s183 = scalar_lea.sflag [#allocation6], %s182
        %s184 = sand.u32 %s56, 1
        %s185 = smul.addr %s184, 8
        %s186 = scalar_lea.vmem [#allocation5], %s185
        %p187 = pneg %p69
        %p188 = pneg %p66
        %p189 = pneg %p95
        %p190 = pneg %p92
        %s191 = sand.u32 %s82, 1
        %s192 = scalar_lea.sflag [#allocation4], %s191
        %s193 = sand.u32 %s82, 1
        %s194 = scalar_lea.vmem [#allocation7], %s193
        %v195 = vld [vmem:[%s161] sm:$0xff]
        %v196 = vld [vmem:[%s170] sm:$0xff]
        %v197 = vrot.slane %v195, 4
        %v198 = vmax.f32 %v195, %v197
        %v199 = vrot.slane %v198, 2
        %v200 = vmax.f32 %v198, %v199
        %v201 = vrot.slane %v200, 1
        %v202 = vmax.f32 %v200, %v201
        %v203 = vsub.f32 %v195, %v202
        %v204 = vmul.f32 %v203, 1.442695
        %v205 = vpow.pop %v204
        %v206 = vrot.slane %v205, 4
        %v207 = vadd.f32 %v205, %v206
        %v208 = vrot.slane %v207, 2
        %v209 = vadd.f32 %v207, %v208
        %v210 = vrot.slane %v209, 1
        %v211 = vadd.f32 %v209, %v210
        %v212 = vsub.f32 %v202, %v195
        %v213 = vmul.f32 %v196, %v212
        %v214 = vrot.slane %v213, 4
        %v215 = vadd.f32 %v213, %v214
        %v216 = vrot.slane %v215, 2
        %v217 = vadd.f32 %v215, %v216
        %v218 = vrot.slane %v217, 1
        %v219 = vadd.f32 %v217, %v218
        %v220 = vlog2.pop %v211
        %v221 = vmul.f32 %v220, 0.6931472
        %v222 = vrot.slane %v196, 4
        %v223 = vadd.f32 %v196, %v222
        %v224 = vrot.slane %v223, 2
        %v225 = vadd.f32 %v223, %v224
        %v226 = vrot.slane %v225, 1
        %v227 = vadd.f32 %v225, %v226
        %v228 = vmul.f32 %v221, %v227
        %v229 = vadd.f32 %v219, %v228
        %s230 = smul.u32 %s22, 128
        %v231 = vlaneseq
        %v232 = vand.u32 %v231, 127
        %v233 = vstv %s230
        %v234 = vadd.s32 %v233, %v232
        %vm235 = vcmp.lt.s32.totalorder %v234, 300
        %v236 = vsel %vm235, %v229, 0.0
        %237 = vst [vmem:[%s194] sm:$0x1] %v236
        %s238 = sand.u32 %s82, 1
        %s239 = scalar_lea.sflag [#allocation4], %s238
        %s240 = sand.u32 %s82, 1
        %s241 = scalar_lea.vmem [#allocation7], %s240
        // Predicated region
        $region37: #{tpu_custom_call.1} parent=27 // pred_check
          %p242 = pneg %p92
        $region38: #{tpu_custom_call.1} parent=27 // pred_check_branch
          %244 = sbr.rel (%p242) target = $region40
        $region39: #{tpu_custom_call.1} parent=27 // pred_region
          %s246 = ssub.s32 16, 16
          %247 = vsyncadd %s239, %s246
          %s248 = smul.addr %s22, 16
          %s249 = scalar_lea.hbm %s2, %s248
          %s251 = sshll.u32 %s241, 4
          %s252 = int_to_ptr.vmem [resolvable:$true] %s251
          %254 = dma.vmem_to_hbm [thread:$0]  %s252, 16, %s249, %s239
        $region40: #{tpu_custom_call.1} parent=27 // pred_fallthru
          _
      $region28: #{tpu_custom_call.1} parent=5 // pred_fallthru
        _
      %p255 = scmp.le.s32.totalorder 2, %s17
      // Predicated region
      $region41: #{tpu_custom_call.1} parent=5 // pred_check
        %p256 = pneg %p255
      $region42: #{tpu_custom_call.1} parent=5 // pred_check_branch
        %258 = sbr.rel (%p256) target = $region44
      $region43: #{tpu_custom_call.1} parent=5 // pred_region
        %s259 = ssub.s32 %s17, 2
        // Predicated region
        $region45: #{tpu_custom_call.1} parent=43 // pred_check
          %p260 = pneg %p98
        $region46: #{tpu_custom_call.1} parent=43 // pred_check_branch
          %262 = sbr.rel (%p260) target = $region48
        $region47: #{tpu_custom_call.1} parent=43 // pred_region
          %s263 = sand.u32 %s83, 1
          %s264 = scalar_lea.sflag [#allocation4], %s263
          %s265 = sand.u32 %s83, 1
          %s266 = scalar_lea.vmem [#allocation7], %s265
          %267 = dma.done %s264, 16
        $region48: #{tpu_custom_call.1} parent=43 // pred_fallthru
          _
      $region44: #{tpu_custom_call.1} parent=5 // pred_fallthru
        _
    $region6: #{tpu_custom_call.1} parent=1 // loop_footer
      %s21 = sadd.s32 1, %s17
    $region7: #{tpu_custom_call.1} parent=1 // loop_footer_branch
      %16 = sbr.rel target = $region3
    $region8: #{tpu_custom_call.1} parent=1 // loop_exit
      _
    %268 = vsyncpa [#allocation3], 1
    %s269 = scalar_lea.sflag [#allocation3], 1
    %270 = vsyncpa %s269, 1
    %271 = vsyncpa [#allocation6], 1
    %s272 = scalar_lea.sflag [#allocation6], 1
    %273 = vsyncpa %s272, 1
    %274 = vsyncpa [#allocation4], 1
    %s275 = scalar_lea.sflag [#allocation4], 1
    %276 = vsyncpa %s275, 1

</llo_original>
